<compile_context>
chip_gen: v7x
topology: tpu7x:2x2x1
jax: 0.10.0
libtpu: 0.0.40
codegen_flags: <defaults>
</compile_context>

<pallas_src>
import jax
import jax.numpy as jnp
from jax.experimental import pallas as pl
from jax.experimental.pallas import tpu as pltpu


def dtr_kernel(x_ref, bproj_ref, w_ref, o_ref):
    # x_ref:     (TM, D_in)        rows = flattened (batch, seq)
    # bproj_ref: (TM, D_out_pad)   pre-projected bias rows (bias @ W), row-tiled
    # w_ref:     (D_in, D_out_pad) linear weight (transposed, column-padded)
    # o_ref:     (TM, D_out_pad)
    y = jnp.dot(x_ref[...], w_ref[...], preferred_element_type=jnp.float32)
    o_ref[...] = (y - bproj_ref[...]).astype(o_ref.dtype)


def dtr_layer(x, bias, weight_t, *, tm_max=256):
    """x: (B, S, D_in), bias: (1, S, D_in), weight_t: (D_in, D_out)."""
    B, S, D_in = x.shape
    D_out = weight_t.shape[1]
    N = B * S

    # --- lane-dense output: pad D_out up to a multiple of 128 ---------------
    d_out_p = pl.cdiv(D_out, 128) * 128
    if d_out_p != D_out:
        weight_t = jnp.pad(weight_t, ((0, 0), (0, d_out_p - D_out)))

    # --- fold batch-invariant bias into output space: (x-b)@W = x@W - b@W ---
    bias_proj = jnp.dot(bias[0], weight_t,
                        precision=jax.lax.Precision.HIGHEST)   # (S, d_out_p)
    bias_rows = jnp.tile(bias_proj, (B, 1))                    # (N, d_out_p)

    # --- flatten (B, S) rows and pick a row tile -----------------------------
    x2d = x.reshape(N, D_in)
    n_pad = pl.cdiv(N, 8) * 8           # sublane multiple
    tm = min(tm_max, n_pad)
    n_pad = pl.cdiv(n_pad, tm) * tm     # make the tile count exact
    if n_pad != N:
        x2d = jnp.pad(x2d, ((0, n_pad - N), (0, 0)))
        bias_rows = jnp.pad(bias_rows, ((0, n_pad - N), (0, 0)))

    grid = (n_pad // tm,)
    out = pl.pallas_call(
        dtr_kernel,
        out_shape=jax.ShapeDtypeStruct((n_pad, d_out_p), x.dtype),
        grid_spec=pl.GridSpec(
            grid=grid,
            in_specs=[
                pl.BlockSpec((tm, D_in), lambda i: (i, 0)),
                pl.BlockSpec((tm, d_out_p), lambda i: (i, 0)),
                # constant index_map -> weight stays resident, no refetch.
                pl.BlockSpec((D_in, d_out_p), lambda i: (0, 0)),
            ],
            out_specs=pl.BlockSpec((tm, d_out_p), lambda i: (i, 0)),
        ),
        compiler_params=pltpu.CompilerParams(
            dimension_semantics=("parallel",),   # shards rows across TCs on v7x
        ),
    )(x2d, bias_rows, weight_t)

    # Strip row / lane padding and restore (B, S, D_out).
    return out[:N, :D_out].reshape(B, S, D_out)


if __name__ == "__main__":
    # Small shapes consistent with the module:
    #   batch=2, seq = max_seq_length = 8, input_size=32, output_size=32
    B, S, D_in, D_out = 2, 8, 32, 32

    key = jax.random.PRNGKey(0)
    k_x, k_w, k_b = jax.random.split(key, 3)

    x = jax.random.normal(k_x, (B, S, D_in), dtype=jnp.float32)

    # Parameters mirroring the PyTorch module:
    #   bias: (1, max_seq_length, input_size)  (zeros at init; use a small
    #   nonzero bias here to exercise the bias-fold path)
    #   lin.weight ~ N(0, 0.02), shape (output_size, input_size); the kernel
    #   keeps its transpose (D_in, D_out) and computes (x - bias) @ W^T.
    bias = 0.1 * jax.random.normal(k_b, (1, S, D_in), dtype=jnp.float32)
    weight = 0.02 * jax.random.normal(k_w, (D_out, D_in), dtype=jnp.float32)
    weight_t = weight.T  # (D_in, D_out)

    out = dtr_layer(x, bias, weight_t)
    out = jax.block_until_ready(out)

    # Reference in plain JAX (dropout p=0.0 is identity).
    ref = jnp.einsum("bsd,do->bso", x - bias, weight_t,
                     precision=jax.lax.Precision.HIGHEST)
    assert out.shape == (B, S, D_out)
    assert jnp.allclose(out, ref, atol=1e-4, rtol=1e-4)

    # TODO(synk): dropout with p > 0 would need pltpu.prng_seed/prng_random_bits.
    print("KERNEL_OK")
</pallas_src>

<mosaic_0001>
module attributes {stable_mosaic.version = 11 : i64} {
  func.func @dtr_kernel(%arg0: i32, %arg1: memref<16x32xf32, #tpu.memory_space<vmem>>, %arg2: memref<16x128xf32, #tpu.memory_space<vmem>>, %arg3: memref<32x128xf32, #tpu.memory_space<vmem>>, %arg4: memref<16x128xf32, #tpu.memory_space<vmem>>) attributes {dimension_semantics = [#tpu.dimension_semantics<parallel>], iteration_bounds = array<i64: 1>, scalar_prefetch = 0 : i64, scratch_operands = 0 : i64, tpu.core_type = #tpu.core_type<tc>, window_params = [{transform_indices = @transform_0, window_bounds = array<i64: 16, 32>}, {transform_indices = @transform_1, window_bounds = array<i64: 16, 128>}, {pipeline_mode = #tpu.pipeline_mode<synchronous>, transform_indices = @transform_2, window_bounds = array<i64: 32, 128>}, {transform_indices = @transform_3, window_bounds = array<i64: 16, 128>}]} {
    %c0 = arith.constant 0 : index
    %c0_0 = arith.constant 0 : index
    %0 = vector.load %arg1[%c0, %c0_0] : memref<16x32xf32, #tpu.memory_space<vmem>>, vector<16x32xf32>
    %c0_1 = arith.constant 0 : index
    %c0_2 = arith.constant 0 : index
    %1 = vector.load %arg3[%c0_1, %c0_2] : memref<32x128xf32, #tpu.memory_space<vmem>>, vector<32x128xf32>
    %cst = arith.constant dense<0.000000e+00> : vector<16x128xf32>
    %2 = tpu.matmul %0, %1, %cst {dimension_numbers = #tpu.dot_dimension_numbers<[1], [0], [0], [1], [0, 0, 1, 1], [], []>} : vector<16x32xf32>, vector<32x128xf32>, vector<16x128xf32> -> vector<16x128xf32>
    %c0_3 = arith.constant 0 : index
    %c0_4 = arith.constant 0 : index
    %3 = vector.load %arg2[%c0_3, %c0_4] : memref<16x128xf32, #tpu.memory_space<vmem>>, vector<16x128xf32>
    %4 = arith.subf %2, %3 : vector<16x128xf32>
    %c0_5 = arith.constant 0 : index
    %c0_6 = arith.constant 0 : index
    %5 = vector.load %arg4[%c0_5, %c0_6] : memref<16x128xf32, #tpu.memory_space<vmem>>, vector<16x128xf32>
    tpu.vector_store %arg4[%c0_5, %c0_6], %4 {strides = array<i32>} : memref<16x128xf32, #tpu.memory_space<vmem>>, vector<16x128xf32>,
    return
  }
  func.func @transform_0(%arg0: i32) -> (i32, i32) {
    %c0_i32 = arith.constant 0 : i32
    %c0_i32_0 = arith.constant 0 : i32
    return %arg0, %c0_i32 : i32, i32
  }
  func.func @transform_1(%arg0: i32) -> (i32, i32) {
    %c0_i32 = arith.constant 0 : i32
    %c0_i32_0 = arith.constant 0 : i32
    return %arg0, %c0_i32 : i32, i32
  }
  func.func @transform_2(%arg0: i32) -> (i32, i32) {
    %c0_i32 = arith.constant 0 : i32
    %c0_i32_0 = arith.constant 0 : i32
    %c0_i32_1 = arith.constant 0 : i32
    return %c0_i32, %c0_i32_0 : i32, i32
  }
  func.func @transform_3(%arg0: i32) -> (i32, i32) {
    %c0_i32 = arith.constant 0 : i32
    %c0_i32_0 = arith.constant 0 : i32
    return %arg0, %c0_i32 : i32, i32
  }
}

</mosaic_0001>

<llo_original>
// kernel: tpu_custom_call.1
$region0: #{tpu_custom_call.1}
  #allocation0 [shape = 'u32[]', space=smem, size = 0x4, offset = 0x4, fixed_abs, tag = 'smem constant byte address 0x4 - core index']
  #allocation1 [shape = 'u32[144,128]{1,0:T(1,128)}', space=vmem, size = 0x12000, scoped, tag = 'internal scratch']
  %s0 = inlined_call_operand.hbm [shape: f32[16,32], index: 0, kind: input, shape index: {}]
  %s1 = inlined_call_operand.hbm [shape: f32[16,128], index: 1, kind: input, shape index: {}]
  %s2 = inlined_call_operand.hbm [shape: f32[32,128], index: 2, kind: input, shape index: {}]
  %s3 = inlined_call_operand.hbm [shape: f32[16,128], index: 3, kind: output, shape index: {}]
  %s4 = sld [smem:[#allocation0]]
  $region34: #{tpu_custom_call.1} parent=0
    _
  %s6 = ssub.s32 1, %s4
  %s7 = scalar_select 0, %s6, %s4
  $region1: #{tpu_custom_call.1} parent=0
    #allocation2 [shape = 'u8[8192]{0}', space=vmem, size = 0x2000, scoped, tag = 'input window, operand 0, single buffered']
    #allocation3 [shape = 's32[1]{0}', space=sflag, size = 0x4, scoped, tag = 'scoped memory for tpu_custom_call.1']
    #allocation4 [shape = 's32[1]{0}', space=sflag, size = 0x4, scoped, tag = 'scoped memory for tpu_custom_call.1']
    #allocation5 [shape = 'u8[8192]{0}', space=vmem, size = 0x2000, scoped, tag = 'input window, operand 1, single buffered']
    #allocation6 [shape = 's32[1]{0}', space=sflag, size = 0x4, scoped, tag = 'scoped memory for tpu_custom_call.1']
    #allocation7 [shape = 'u8[16384]{0}', space=vmem, size = 0x4000, scoped, tag = 'input window, operand 2, single buffered']
    #allocation8 [shape = 'u8[8192]{0}', space=vmem, size = 0x2000, scoped, tag = 'output window, operand 0, single buffered']
    %8 = vsyncpa [#allocation3], 0
    %9 = vsyncpa [#allocation6], 0
    %10 = vsyncpa [#allocation4], 0
    // Predicated region
    $region2: #{tpu_custom_call.1} parent=1 // pred_check
      _
    $region3: #{tpu_custom_call.1} parent=1 // pred_check_branch
      %12 = sbr.rel (0) target = $region5
    $region4: #{tpu_custom_call.1} parent=1 // pred_region
      %s14 = ssub.s32 256, 256
      %15 = vsyncadd [#allocation3], %s14
      %s16 = sshll.u32 [#allocation2], 4
      %s17 = int_to_ptr.vmem [resolvable:$true] %s16
      %22 = dma.hbm_to_vmem [thread:$0]  %s0, 256, %s17, [#allocation3], 128, 128, 8
    $region5: #{tpu_custom_call.1} parent=1 // pred_fallthru
      _
    // Predicated region
    $region6: #{tpu_custom_call.1} parent=1 // pred_check
      _
    $region7: #{tpu_custom_call.1} parent=1 // pred_check_branch
      %24 = sbr.rel (0) target = $region9
    $region8: #{tpu_custom_call.1} parent=1 // pred_region
      %s26 = ssub.s32 256, 256
      %27 = vsyncadd [#allocation6], %s26
      %s28 = sshll.u32 [#allocation5], 4
      %s29 = int_to_ptr.vmem [resolvable:$true] %s28
      %34 = dma.hbm_to_vmem [thread:$0]  %s1, 256, %s29, [#allocation6], 128, 128, 8
    $region9: #{tpu_custom_call.1} parent=1 // pred_fallthru
      _
    // Predicated region
    $region10: #{tpu_custom_call.1} parent=1 // pred_check
      _
    $region11: #{tpu_custom_call.1} parent=1 // pred_check_branch
      %36 = sbr.rel (0) target = $region13
    $region12: #{tpu_custom_call.1} parent=1 // pred_region
      %s38 = ssub.s32 512, 512
      %39 = vsyncadd [#allocation6], %s38
      %s40 = sshll.u32 [#allocation7], 4
      %s41 = int_to_ptr.vmem [resolvable:$true] %s40
      %46 = dma.hbm_to_vmem [thread:$0]  %s2, 512, %s41, [#allocation6], 128, 128, 8
    $region13: #{tpu_custom_call.1} parent=1 // pred_fallthru
      _
    // Predicated region
    $region14: #{tpu_custom_call.1} parent=1 // pred_check
      _
    $region15: #{tpu_custom_call.1} parent=1 // pred_check_branch
      %48 = sbr.rel (0) target = $region17
    $region16: #{tpu_custom_call.1} parent=1 // pred_region
      %49 = dma.done [#allocation3], 256
    $region17: #{tpu_custom_call.1} parent=1 // pred_fallthru
      _
    // Predicated region
    $region18: #{tpu_custom_call.1} parent=1 // pred_check
      _
    $region19: #{tpu_custom_call.1} parent=1 // pred_check_branch
      %51 = sbr.rel (0) target = $region21
    $region20: #{tpu_custom_call.1} parent=1 // pred_region
      %52 = dma.done [#allocation6], 256
    $region21: #{tpu_custom_call.1} parent=1 // pred_fallthru
      _
    // Predicated region
    $region22: #{tpu_custom_call.1} parent=1 // pred_check
      _
    $region23: #{tpu_custom_call.1} parent=1 // pred_check_branch
      %54 = sbr.rel (0) target = $region25
    $region24: #{tpu_custom_call.1} parent=1 // pred_region
      %55 = dma.done [#allocation6], 512
    $region25: #{tpu_custom_call.1} parent=1 // pred_fallthru
      _
    %v56 = vld [vmem:[#allocation2] sm:$0xff]
    %v57 = vld [vmem:[#allocation2 + $0x8] sm:$0xff]
    %v58 = vld [vmem:[#allocation7] sm:$0xff]
    %v59 = vld [vmem:[#allocation7 + $0x8] sm:$0xff]
    %v60 = vld [vmem:[#allocation7 + $0x10] sm:$0xff]
    %v61 = vld [vmem:[#allocation7 + $0x18] sm:$0xff]
    %vm62 = vcmask 261120
    %v64 = vsel %vm62, %v56, 0
    %v67 = vsel %vm62, %v57, 0
    %69 = vmatprep.subr.mxu0 0.0
    %70 = vmatpush1.msra.mxu0 %v58
    %71 = vmatprep.subr.mxu0 0.0
    %72 = vmatpush1.msra.mxu0 %v59
    %73 = vmatprep.subr.mxu0 0.0
    %74 = vmatpush1.msra.mxu0 %v60
    %75 = vmatprep.subr.mxu0 0.0
    %76 = vmatpush1.msra.mxu0 %v61
    %77 = vmatprep.subr.mxu0 0.0
    %78 = vmatpush1.msra.mxu0 0.0
    %79 = vmatprep.subr.mxu0 0.0
    %80 = vmatpush1.msra.mxu0 0.0
    %81 = vmatprep.subr.mxu0 0.0
    %82 = vmatpush1.msra.mxu0 0.0
    %83 = vmatprep.subr.mxu0 0.0
    %84 = vmatpush1.msra.mxu0 0.0
    %85 = vmatprep.subr.mxu0 0.0
    %86 = vmatpush1.msra.mxu0 0.0
    %87 = vmatprep.subr.mxu0 0.0
    %88 = vmatpush1.msra.mxu0 0.0
    %89 = vmatprep.subr.mxu0 0.0
    %90 = vmatpush1.msra.mxu0 0.0
    %91 = vmatprep.subr.mxu0 0.0
    %92 = vmatpush1.msra.mxu0 0.0
    %93 = vmatprep.subr.mxu0 0.0
    %94 = vmatpush1.msra.mxu0 0.0
    %95 = vmatprep.subr.mxu0 0.0
    %96 = vmatpush1.msra.mxu0 0.0
    %97 = vmatprep.subr.mxu0 0.0
    %98 = vmatpush1.msra.mxu0 0.0
    %99 = vmatprep.subr.mxu0 0.0
    %100 = vmatpush1.msra.mxu0 0.0
    %101 = vmatprep.subr.mxu0 0.0
    %102 = vmatpush1.msra.mxu0 0.0
    %103 = vmatprep.subr.mxu0 0.0
    %104 = vmatpush1.msra.mxu0 0.0
    %105 = vmatprep.subr.mxu0 0.0
    %106 = vmatpush1.msra.mxu0 0.0
    %107 = vmatprep.subr.mxu0 0.0
    %108 = vmatpush1.msra.mxu0 0.0
    %109 = vmatprep.subr.mxu0 0.0
    %110 = vmatpush1.msra.mxu0 0.0
    %111 = vmatprep.subr.mxu0 0.0
    %112 = vmatpush1.msra.mxu0 0.0
    %113 = vmatprep.subr.mxu0 0.0
    %114 = vmatpush1.msra.mxu0 0.0
    %115 = vmatprep.subr.mxu0 0.0
    %116 = vmatpush1.msra.mxu0 0.0
    %117 = vmatprep.subr.mxu0 0.0
    %118 = vmatpush1.msra.mxu0 0.0
    %119 = vmatprep.subr.mxu0 0.0
    %120 = vmatpush1.msra.mxu0 0.0
    %121 = vmatprep.subr.mxu0 0.0
    %122 = vmatpush1.msra.mxu0 0.0
    %123 = vmatprep.subr.mxu0 0.0
    %124 = vmatpush1.msra.mxu0 0.0
    %125 = vmatprep.subr.mxu0 0.0
    %126 = vmatpush1.msra.mxu0 0.0
    %127 = vmatprep.subr.mxu0 0.0
    %128 = vmatpush1.msra.mxu0 0.0
    %129 = vmatprep.subr.mxu0 0.0
    %130 = vmatpush1.msra.mxu0 0.0
    %131 = vmatprep.subr.mxu0 0.0
    %132 = vmatpush1.msra.mxu0 0.0
    %133 = vmatprep.mubr.f32.mxu0 0.0
    %134 = vmatmul.mubr.f32.gmra.mrb[0].mxu0 %v64
    %v135 = vpop.f32.mrb[0].mxu0
    %v136 = vadd.f32 0.0, %v135
    %v137 = vpop.f32.mrb[0].mxu0
    %138 = vmatprep.mubr.f32.mxu0 0.0
    %139 = vmatmul.mubr.f32.gmra.mrb[0].mxu0 %v67
    %v140 = vpop.f32.mrb[0].mxu0
    %v141 = vadd.f32 0.0, %v140
    %v142 = vpop.f32.mrb[0].mxu0
    %143 = vdwg.mxu0
    %v144 = vld [vmem:[#allocation5] sm:$0xff]
    %v145 = vld [vmem:[#allocation5 + $0x8] sm:$0xff]
    %v146 = vsub.f32 %v136, %v144
    %v147 = vsub.f32 %v141, %v145
    %148 = vst [vmem:[#allocation8] sm:$0xff] %v146
    %149 = vst [vmem:[#allocation8 + $0x8] sm:$0xff] %v147
    // Predicated region
    $region26: #{tpu_custom_call.1} parent=1 // pred_check
      _
    $region27: #{tpu_custom_call.1} parent=1 // pred_check_branch
      %151 = sbr.rel (0) target = $region29
    $region28: #{tpu_custom_call.1} parent=1 // pred_region
      %s153 = ssub.s32 256, 256
      %154 = vsyncadd [#allocation4], %s153
      %s155 = sshll.u32 [#allocation8], 4
      %s156 = int_to_ptr.vmem [resolvable:$true] %s155
      %161 = dma.vmem_to_hbm [thread:$0]  %s156, 256, %s3, [#allocation4], 128, 128, 8
    $region29: #{tpu_custom_call.1} parent=1 // pred_fallthru
      _
    // Predicated region
    $region30: #{tpu_custom_call.1} parent=1 // pred_check
      _
    $region31: #{tpu_custom_call.1} parent=1 // pred_check_branch
      %163 = sbr.rel (0) target = $region33
    $region32: #{tpu_custom_call.1} parent=1 // pred_region
      %164 = dma.done [#allocation4], 256
    $region33: #{tpu_custom_call.1} parent=1 // pred_fallthru
      _
    %165 = vsyncpa [#allocation3], 1
    %166 = vsyncpa [#allocation6], 1
    %167 = vsyncpa [#allocation4], 1

</llo_original>
